<compile_context>
chip_gen: v6e
topology: v6e:2x2x1
jax: 0.10.0
libtpu: 0.0.40
codegen_flags: <defaults>
</compile_context>

<pallas_src>
import functools
import math

import jax
import jax.numpy as jnp
from jax.experimental import pallas as pl
from jax.experimental.pallas import tpu as pltpu

_TWO_LOG_TWO_PI = 2.0 * math.log(2.0 * math.pi)


def _round_up(x, m):
    return (x + m - 1) // m * m


def _nll_kernel(x_ref, s_ref, t_ref, w_ref, out_ref, acc_ref,
                *, num_rows, inv_n):
    pid = pl.program_id(0)

    @pl.when(pid == 0)
    def _init():
        acc_ref[...] = jnp.zeros_like(acc_ref)

    # Inputs arrive in their native dtype; cast to f32 in-kernel (cheap VPU work).
    x = x_ref[...].astype(jnp.float32)   # (C, tN)
    s = s_ref[...].astype(jnp.float32)   # (C, tN)
    t = t_ref[...].astype(jnp.float32)   # (C, tN)
    w = w_ref[...].astype(jnp.float32)   # (1, tN)

    # sigma = sigmoid(s).  With e = exp(-s):
    #   (t-x)^2 / (2*sigma^2) = 0.5*(t-x)^2*(1+e)^2     (VPU multiplies only)
    #   0.5*log(sigma^2)      = -log(1+e)               (one EUP log)
    # -> 2 transcendentals per element instead of 3, and no divide.
    e = jnp.exp(-s)
    inv_sigma = 1.0 + e
    diff = t - x
    term = 0.5 * diff * diff * inv_sigma * inv_sigma - jnp.log(inv_sigma)  # (C, tN)

    # Sum over the C (=4) sublane rows with explicit adds (no lane reduce).
    row = term[0:1, :]
    for i in range(1, num_rows):
        row = row + term[i:i + 1, :]     # (1, tN)

    # mean((row + K) * w): fold the constant into the accumulate; padded lanes
    # have w == 0 and contribute nothing.
    acc_ref[...] += (row + jnp.float32(_TWO_LOG_TWO_PI)) * w

    @pl.when(pid == pl.num_programs(0) - 1)
    def _finalize():
        # Single cross-lane reduce at the very end; 1/N is a baked constant.
        out_ref[0, 0] = jnp.sum(acc_ref[...]) * jnp.float32(inv_n)


def nll_loss_pallas(inp, inp_std, target, iou_weight, *, max_tile=8192):
    """Pallas TPU implementation of NLLoss.forward.

    inp, inp_std, target: (N, C) float arrays
    iou_weight:           (N,)   float array
    returns: scalar float32 loss
    """
    n, c = inp.shape

    # Lane-dense layout: (C, N) with the large N dim on the 128-lane axis.
    x_t = jnp.transpose(inp)             # (C, N), native dtype
    s_t = jnp.transpose(inp_std)
    t_t = jnp.transpose(target)
    w_t = iou_weight.reshape(1, n)       # (1, N), native dtype

    # Lane-dense tile along N (multiple of 128, large to amortize per-step
    # overhead; per-step VMEM stays tiny even on v7x's 64 MiB).
    tn = min(_round_up(n, 128), max_tile)
    n_pad = _round_up(n, tn)
    if n_pad != n:
        pad = ((0, 0), (0, n_pad - n))
        x_t = jnp.pad(x_t, pad)
        s_t = jnp.pad(s_t, pad)
        t_t = jnp.pad(t_t, pad)
        w_t = jnp.pad(w_t, pad)          # zero weight -> padded lanes contribute 0

    grid = (n_pad // tn,)
    kernel = functools.partial(_nll_kernel, num_rows=c, inv_n=1.0 / n)

    out = pl.pallas_call(
        kernel,
        out_shape=jax.ShapeDtypeStruct((1, 1), jnp.float32),
        grid_spec=pltpu.PrefetchScalarGridSpec(
            num_scalar_prefetch=0,
            grid=grid,
            in_specs=[
                pl.BlockSpec((c, tn), lambda i: (0, i)),
                pl.BlockSpec((c, tn), lambda i: (0, i)),
                pl.BlockSpec((c, tn), lambda i: (0, i)),
                pl.BlockSpec((1, tn), lambda i: (0, i)),
            ],
            out_specs=pl.BlockSpec(memory_space=pltpu.SMEM),
            scratch_shapes=[
                pltpu.VMEM((1, tn), jnp.float32),   # acc: sum((row + K) * w) per lane
            ],
        ),
        compiler_params=pltpu.CompilerParams(
            dimension_semantics=("arbitrary",)),   # reduction axis
    )(x_t, s_t, t_t, w_t)
    return out[0, 0]


def nll_loss_ref(inp, inp_std, target, iou_weight):
    """Pure-JAX reference matching the PyTorch forward exactly."""
    sigma_sq = jnp.square(jax.nn.sigmoid(inp_std.astype(jnp.float32)))
    first_term = jnp.square(target.astype(jnp.float32)
                            - inp.astype(jnp.float32)) / (2.0 * sigma_sq)
    second_term = 0.5 * jnp.log(sigma_sq)
    sum_before_iou = (first_term + second_term).sum(axis=1) + 2.0 * jnp.log(
        2.0 * jnp.float32(math.pi))
    return (sum_before_iou * iou_weight.astype(jnp.float32)).mean()


if __name__ == "__main__":
    key = jax.random.PRNGKey(0)

    # Small case (single grid step): N=16 boxes, C=4 regression deltas.
    k1, k2, k3, k4, k5, k6, k7, k8 = jax.random.split(key, 8)
    N, C = 16, 4
    inp = jax.random.normal(k1, (N, C), dtype=jnp.float32)
    inp_std = jax.random.normal(k2, (N, C), dtype=jnp.float32)
    target = jax.random.normal(k3, (N, C), dtype=jnp.float32)
    iou_weight = jax.random.uniform(k4, (N,), dtype=jnp.float32)

    loss = jax.block_until_ready(nll_loss_pallas(inp, inp_std, target, iou_weight))
    ref = nll_loss_ref(inp, inp_std, target, iou_weight)
    assert jnp.allclose(loss, ref, rtol=1e-5, atol=1e-5), (loss, ref)

    # Multi-tile case: exercises the gridded accumulate path (3 grid steps,
    # last tile padded with zero weights).
    N2 = 300
    inp2 = jax.random.normal(k5, (N2, C), dtype=jnp.float32)
    std2 = jax.random.normal(k6, (N2, C), dtype=jnp.float32)
    tgt2 = jax.random.normal(k7, (N2, C), dtype=jnp.float32)
    w2 = jax.random.uniform(k8, (N2,), dtype=jnp.float32)

    loss2 = jax.block_until_ready(
        nll_loss_pallas(inp2, std2, tgt2, w2, max_tile=128))
    ref2 = nll_loss_ref(inp2, std2, tgt2, w2)
    assert jnp.allclose(loss2, ref2, rtol=1e-5, atol=1e-5), (loss2, ref2)

    print("KERNEL_OK")
</pallas_src>

<mosaic_0001>
module attributes {stable_mosaic.version = 11 : i64} {
  func.func @_nll_kernel(%arg0: i32, %arg1: memref<4x128xf32, #tpu.memory_space<vmem>>, %arg2: memref<4x128xf32, #tpu.memory_space<vmem>>, %arg3: memref<4x128xf32, #tpu.memory_space<vmem>>, %arg4: memref<1x128xf32, #tpu.memory_space<vmem>>, %arg5: memref<1x1xf32, #tpu.memory_space<smem>>, %arg6: memref<1x128xf32, #tpu.memory_space<vmem>>) attributes {dimension_semantics = [#tpu.dimension_semantics<arbitrary>], iteration_bounds = array<i64: 1>, scalar_prefetch = 0 : i64, scratch_operands = 1 : i64, tpu.core_type = #tpu.core_type<tc>, window_params = [{transform_indices = @transform_0, window_bounds = array<i64: 4, 128>}, {transform_indices = @transform_1, window_bounds = array<i64: 4, 128>}, {transform_indices = @transform_2, window_bounds = array<i64: 4, 128>}, {transform_indices = @transform_3, window_bounds = array<i64: 1, 128>}, {transform_indices = @transform_4, window_bounds = array<i64: 1, 1>}]} {
    %c0_i32 = arith.constant 0 : i32
    %0 = arith.cmpi eq, %arg0, %c0_i32 : i32
    %1 = arith.extui %0 : i1 to i32
    %c0_i32_0 = arith.constant 0 : i32
    %2 = arith.cmpi ne, %1, %c0_i32_0 : i32
    scf.if %2 {
      %cst_17 = arith.constant 0.000000e+00 : f32
      %36 = vector.broadcast %cst_17 : f32 to vector<1x128xf32>
      %c0_18 = arith.constant 0 : index
      %c0_19 = arith.constant 0 : index
      %37 = vector.load %arg6[%c0_18, %c0_19] : memref<1x128xf32, #tpu.memory_space<vmem>>, vector<1x128xf32>
      tpu.vector_store %arg6[%c0_18, %c0_19], %36 {strides = array<i32>} : memref<1x128xf32, #tpu.memory_space<vmem>>, vector<1x128xf32>,
    } else {
    }
    %c0 = arith.constant 0 : index
    %c0_1 = arith.constant 0 : index
    %3 = vector.load %arg1[%c0, %c0_1] : memref<4x128xf32, #tpu.memory_space<vmem>>, vector<4x128xf32>
    %c0_2 = arith.constant 0 : index
    %c0_3 = arith.constant 0 : index
    %4 = vector.load %arg2[%c0_2, %c0_3] : memref<4x128xf32, #tpu.memory_space<vmem>>, vector<4x128xf32>
    %c0_4 = arith.constant 0 : index
    %c0_5 = arith.constant 0 : index
    %5 = vector.load %arg3[%c0_4, %c0_5] : memref<4x128xf32, #tpu.memory_space<vmem>>, vector<4x128xf32>
    %c0_6 = arith.constant 0 : index
    %c0_7 = arith.constant 0 : index
    %6 = vector.load %arg4[%c0_6, %c0_7] : memref<1x128xf32, #tpu.memory_space<vmem>>, vector<1x128xf32>
    %cst = arith.constant 0.000000e+00 : f32
    %7 = vector.broadcast %cst : f32 to vector<4x128xf32>
    %8 = arith.subf %7, %4 : vector<4x128xf32>
    %9 = math.exp %8 : vector<4x128xf32>
    %cst_8 = arith.constant 1.000000e+00 : f32
    %10 = vector.broadcast %cst_8 : f32 to vector<4x128xf32>
    %11 = arith.addf %10, %9 : vector<4x128xf32>
    %12 = arith.subf %5, %3 : vector<4x128xf32>
    %cst_9 = arith.constant 5.000000e-01 : f32
    %13 = vector.broadcast %cst_9 : f32 to vector<4x128xf32>
    %14 = arith.mulf %13, %12 : vector<4x128xf32>
    %15 = arith.mulf %14, %12 : vector<4x128xf32>
    %16 = arith.mulf %15, %11 : vector<4x128xf32>
    %17 = arith.mulf %16, %11 : vector<4x128xf32>
    %18 = math.log %11 : vector<4x128xf32>
    %19 = arith.subf %17, %18 : vector<4x128xf32>
    %20 = vector.extract_strided_slice %19 {offsets = [0, 0], sizes = [1, 128], strides = [1, 1]} : vector<4x128xf32> to vector<1x128xf32>
    %21 = vector.extract_strided_slice %19 {offsets = [1, 0], sizes = [1, 128], strides = [1, 1]} : vector<4x128xf32> to vector<1x128xf32>
    %22 = arith.addf %20, %21 : vector<1x128xf32>
    %23 = vector.extract_strided_slice %19 {offsets = [2, 0], sizes = [1, 128], strides = [1, 1]} : vector<4x128xf32> to vector<1x128xf32>
    %24 = arith.addf %22, %23 : vector<1x128xf32>
    %25 = vector.extract_strided_slice %19 {offsets = [3, 0], sizes = [1, 128], strides = [1, 1]} : vector<4x128xf32> to vector<1x128xf32>
    %26 = arith.addf %24, %25 : vector<1x128xf32>
    %c0_10 = arith.constant 0 : index
    %c0_11 = arith.constant 0 : index
    %27 = vector.load %arg6[%c0_10, %c0_11] : memref<1x128xf32, #tpu.memory_space<vmem>>, vector<1x128xf32>
    %cst_12 = arith.constant 3.67575407 : f32
    %28 = vector.broadcast %cst_12 : f32 to vector<1x128xf32>
    %29 = arith.addf %26, %28 : vector<1x128xf32>
    %30 = arith.mulf %29, %6 : vector<1x128xf32>
    %31 = arith.addf %27, %30 : vector<1x128xf32>
    %c0_13 = arith.constant 0 : index
    %c0_14 = arith.constant 0 : index
    %32 = vector.load %arg6[%c0_13, %c0_14] : memref<1x128xf32, #tpu.memory_space<vmem>>, vector<1x128xf32>
    tpu.vector_store %arg6[%c0_13, %c0_14], %31 {strides = array<i32>} : memref<1x128xf32, #tpu.memory_space<vmem>>, vector<1x128xf32>,
    %c0_i32_15 = arith.constant 0 : i32
    %33 = arith.cmpi eq, %arg0, %c0_i32_15 : i32
    %34 = arith.extui %33 : i1 to i32
    %c0_i32_16 = arith.constant 0 : i32
    %35 = arith.cmpi ne, %34, %c0_i32_16 : i32
    scf.if %35 {
      %c0_17 = arith.constant 0 : index
      %c0_18 = arith.constant 0 : index
      %36 = vector.load %arg6[%c0_17, %c0_18] : memref<1x128xf32, #tpu.memory_space<vmem>>, vector<1x128xf32>
      %37 = vector.shape_cast %36 : vector<1x128xf32> to vector<1x1x128xf32>
      %cst_19 = arith.constant dense<0.000000e+00> : vector<1xf32>
      %38 = vector.multi_reduction <add>, %37, %cst_19 [1, 2] : vector<1x1x128xf32> to vector<1xf32>
      %39 = vector.shape_cast %38 : vector<1xf32> to vector<1x1x1xf32>
      %40 = vector.extract %39[0, 0, 0] : f32 from vector<1x1x1xf32>
      %cst_20 = arith.constant 6.250000e-02 : f32
      %41 = arith.mulf %40, %cst_20 : f32
      %c0_21 = arith.constant 0 : index
      %c0_22 = arith.constant 0 : index
      %42 = memref.load %arg5[%c0_21, %c0_22] : memref<1x1xf32, #tpu.memory_space<smem>>
      memref.store %41, %arg5[%c0_21, %c0_22] : memref<1x1xf32, #tpu.memory_space<smem>>
    } else {
    }
    return
  }
  func.func @transform_0(%arg0: i32) -> (i32, i32) {
    %c0_i32 = arith.constant 0 : i32
    %c0_i32_0 = arith.constant 0 : i32
    return %c0_i32, %arg0 : i32, i32
  }
  func.func @transform_1(%arg0: i32) -> (i32, i32) {
    %c0_i32 = arith.constant 0 : i32
    %c0_i32_0 = arith.constant 0 : i32
    return %c0_i32, %arg0 : i32, i32
  }
  func.func @transform_2(%arg0: i32) -> (i32, i32) {
    %c0_i32 = arith.constant 0 : i32
    %c0_i32_0 = arith.constant 0 : i32
    return %c0_i32, %arg0 : i32, i32
  }
  func.func @transform_3(%arg0: i32) -> (i32, i32) {
    %c0_i32 = arith.constant 0 : i32
    %c0_i32_0 = arith.constant 0 : i32
    return %c0_i32, %arg0 : i32, i32
  }
  func.func @transform_4(%arg0: i32) -> (i32, i32) {
    %c0_i32 = arith.constant 0 : i32
    %c0_i32_0 = arith.constant 0 : i32
    %c0_i32_1 = arith.constant 0 : i32
    return %c0_i32, %c0_i32_0 : i32, i32
  }
}

</mosaic_0001>

<llo_original>
// kernel: tpu_custom_call.1
$region0: #{tpu_custom_call.1}
  #allocation0 [shape = 'u32[]', space=smem, size = 0x4, offset = 0x4, fixed_abs, tag = 'smem constant byte address 0x4 - core index']
  #allocation1 [shape = 'u32[144,128]{1,0:T(1,128)}', space=vmem, size = 0x12000, scoped, tag = 'internal scratch']
  #allocation2 [shape = 'f32[1,128]{1,0:T(1,128)}', space=vmem, size = 0x200, scoped, tag = 'scratch operand']
  %s0 = inlined_call_operand.hbm [shape: f32[4,128], index: 0, kind: input, shape index: {}]
  %s1 = inlined_call_operand.hbm [shape: f32[4,128], index: 1, kind: input, shape index: {}]
  %s2 = inlined_call_operand.hbm [shape: f32[4,128], index: 2, kind: input, shape index: {}]
  %s3 = inlined_call_operand.vmem [shape: f32[1,128], index: 3, kind: input, shape index: {}]
  %s4 = inlined_call_operand.hbm [shape: f32[1,1], index: 4, kind: output, shape index: {}]
  %s5 = sld [smem:[#allocation0]]
  $region46: #{tpu_custom_call.1} parent=0
    _
  %s7 = ssub.s32 1, %s5
  %s8 = scalar_select 0, %s7, %s5
  $region1: #{tpu_custom_call.1} parent=0
    #allocation3 [shape = 'u8[2048]{0}', space=vmem, size = 0x800, scoped, tag = 'input window, operand 0, single buffered']
    #allocation4 [shape = 's32[1]{0}', space=sflag, size = 0x4, scoped, tag = 'scoped memory for tpu_custom_call.1']
    #allocation5 [shape = 's32[1]{0}', space=sflag, size = 0x4, scoped, tag = 'scoped memory for tpu_custom_call.1']
    #allocation6 [shape = 'u8[2048]{0}', space=vmem, size = 0x800, scoped, tag = 'input window, operand 1, single buffered']
    #allocation7 [shape = 's32[1]{0}', space=sflag, size = 0x4, scoped, tag = 'scoped memory for tpu_custom_call.1']
    #allocation8 [shape = 'u8[2048]{0}', space=vmem, size = 0x800, scoped, tag = 'input window, operand 2, single buffered']
    #allocation9 [shape = 'u8[512]{0}', space=smem, size = 0x200, scoped, tag = 'output window, operand 0, single buffered']
    %9 = vsyncpa [#allocation4], 0
    %10 = vsyncpa [#allocation7], 0
    %11 = vsyncpa [#allocation5], 0
    // Predicated region
    $region2: #{tpu_custom_call.1} parent=1 // pred_check
      _
    $region3: #{tpu_custom_call.1} parent=1 // pred_check_branch
      %13 = sbr.rel (0) target = $region5
    $region4: #{tpu_custom_call.1} parent=1 // pred_region
      %s15 = ssub.s32 64, 64
      %16 = vsyncadd [#allocation4], %s15
      %s18 = sshll.u32 [#allocation3], 4
      %s19 = int_to_ptr.vmem [resolvable:$true] %s18
      %21 = dma.hbm_to_vmem [thread:$0]  %s0, 64, %s19, [#allocation4]
    $region5: #{tpu_custom_call.1} parent=1 // pred_fallthru
      _
    // Predicated region
    $region6: #{tpu_custom_call.1} parent=1 // pred_check
      _
    $region7: #{tpu_custom_call.1} parent=1 // pred_check_branch
      %23 = sbr.rel (0) target = $region9
    $region8: #{tpu_custom_call.1} parent=1 // pred_region
      %s25 = ssub.s32 64, 64
      %26 = vsyncadd [#allocation7], %s25
      %s28 = sshll.u32 [#allocation6], 4
      %s29 = int_to_ptr.vmem [resolvable:$true] %s28
      %31 = dma.hbm_to_vmem [thread:$0]  %s1, 64, %s29, [#allocation7]
    $region9: #{tpu_custom_call.1} parent=1 // pred_fallthru
      _
    // Predicated region
    $region10: #{tpu_custom_call.1} parent=1 // pred_check
      _
    $region11: #{tpu_custom_call.1} parent=1 // pred_check_branch
      %33 = sbr.rel (0) target = $region13
    $region12: #{tpu_custom_call.1} parent=1 // pred_region
      %s35 = ssub.s32 64, 64
      %36 = vsyncadd [#allocation7], %s35
      %s38 = sshll.u32 [#allocation8], 4
      %s39 = int_to_ptr.vmem [resolvable:$true] %s38
      %41 = dma.hbm_to_vmem [thread:$0]  %s2, 64, %s39, [#allocation7]
    $region13: #{tpu_custom_call.1} parent=1 // pred_fallthru
      _
    // Predicated region
    $region14: #{tpu_custom_call.1} parent=1 // pred_check
      _
    $region15: #{tpu_custom_call.1} parent=1 // pred_check_branch
      %43 = sbr.rel (0) target = $region17
    $region16: #{tpu_custom_call.1} parent=1 // pred_region
      _
    $region17: #{tpu_custom_call.1} parent=1 // pred_fallthru
      _
    // Predicated region
    $region18: #{tpu_custom_call.1} parent=1 // pred_check
      _
    $region19: #{tpu_custom_call.1} parent=1 // pred_check_branch
      %45 = sbr.rel (0) target = $region21
    $region20: #{tpu_custom_call.1} parent=1 // pred_region
      %46 = dma.done [#allocation4], 64
    $region21: #{tpu_custom_call.1} parent=1 // pred_fallthru
      _
    // Predicated region
    $region22: #{tpu_custom_call.1} parent=1 // pred_check
      _
    $region23: #{tpu_custom_call.1} parent=1 // pred_check_branch
      %48 = sbr.rel (0) target = $region25
    $region24: #{tpu_custom_call.1} parent=1 // pred_region
      %49 = dma.done [#allocation7], 64
    $region25: #{tpu_custom_call.1} parent=1 // pred_fallthru
      _
    // Predicated region
    $region26: #{tpu_custom_call.1} parent=1 // pred_check
      _
    $region27: #{tpu_custom_call.1} parent=1 // pred_check_branch
      %51 = sbr.rel (0) target = $region29
    $region28: #{tpu_custom_call.1} parent=1 // pred_region
      %52 = dma.done [#allocation7], 64
    $region29: #{tpu_custom_call.1} parent=1 // pred_fallthru
      _
    %p53 = scmp.eq.s32.totalorder 0, 0
    // Predicated region
    $region30: #{tpu_custom_call.1} parent=1 // pred_check
      %p54 = pneg %p53
    $region31: #{tpu_custom_call.1} parent=1 // pred_check_branch
      %56 = sbr.rel (%p54) target = $region33
    $region32: #{tpu_custom_call.1} parent=1 // pred_region
      %57 = vst [vmem:[#allocation2] sm:$0x1] 0.0
    $region33: #{tpu_custom_call.1} parent=1 // pred_fallthru
      _
    %v58 = vld [vmem:[#allocation3] sm:$0xf]
    %v59 = vld [vmem:[#allocation6] sm:$0xf]
    %v60 = vld [vmem:[#allocation8] sm:$0xf]
    %v61 = vld [vmem:[%s3] sm:$0x1]
    %v62 = vsub.f32 0.0, %v59
    %v63 = vmul.f32 %v62, 1.442695
    %v64 = vpow.pop %v63
    %v65 = vadd.f32 %v64, 1.0
    %v66 = vsub.f32 %v60, %v58
    %v67 = vmul.f32 %v66, 0.5
    %v68 = vmul.f32 %v67, %v66
    %v69 = vmul.f32 %v68, %v65
    %v70 = vmul.f32 %v69, %v65
    %v71 = vlog2.pop %v65
    %v72 = vmul.f32 %v71, 0.6931472
    %v73 = vsub.f32 %v70, %v72
    %v75 = vrot.slane %v73, 1
    %v77 = vadd.f32 %v73, %v75
    %v78 = vrot.slane %v73, 2
    %v80 = vadd.f32 %v77, %v78
    %v81 = vrot.slane %v73, 3
    %v83 = vadd.f32 %v80, %v81
    %v84 = vld [vmem:[#allocation2] sm:$0x1]
    %v85 = vadd.f32 %v83, 3.675754
    %v86 = vmul.f32 %v85, %v61
    %v87 = vadd.f32 %v84, %v86
    %88 = vst [vmem:[#allocation2] sm:$0x1] %v87
    // Predicated region
    $region34: #{tpu_custom_call.1} parent=1 // pred_check
      %p89 = pneg %p53
    $region35: #{tpu_custom_call.1} parent=1 // pred_check_branch
      %91 = sbr.rel (%p89) target = $region37
    $region36: #{tpu_custom_call.1} parent=1 // pred_region
      %v92 = vld [vmem:[#allocation2] sm:$0x1]
      %vm93 = vcmask 1040384
      %v94 = vsel %vm93, %v92, 0.0
      %95 = vadd.xlane.f32.xlu0 %v94
      %v96 = vpop.xlane.xlu0 %95
      %v97 = vrot.slane %v96, 4
      %v98 = vadd.f32 %v96, %v97
      %v99 = vrot.slane %v98, 2
      %v100 = vadd.f32 %v98, %v99
      %v101 = vrot.slane %v100, 1
      %v102 = vadd.f32 %v100, %v101
      %s103 = vtos %v102
      %s104 = smul.f32 %s103, 0.0625
      %s105 = scalar_lea.smem [#allocation9], 0
      %106 = sst [smem:[%s105]] %s104
    $region37: #{tpu_custom_call.1} parent=1 // pred_fallthru
      _
    // Predicated region
    $region38: #{tpu_custom_call.1} parent=1 // pred_check
      _
    $region39: #{tpu_custom_call.1} parent=1 // pred_check_branch
      %108 = sbr.rel (0) target = $region41
    $region40: #{tpu_custom_call.1} parent=1 // pred_region
      %s110 = ssub.s32 16, 16
      %111 = vsyncadd [#allocation5], %s110
      %114 = dma.smem_to_hbm [#allocation9], 16, %s4, [#allocation5]
    $region41: #{tpu_custom_call.1} parent=1 // pred_fallthru
      _
    // Predicated region
    $region42: #{tpu_custom_call.1} parent=1 // pred_check
      _
    $region43: #{tpu_custom_call.1} parent=1 // pred_check_branch
      %116 = sbr.rel (0) target = $region45
    $region44: #{tpu_custom_call.1} parent=1 // pred_region
      %117 = dma.done [#allocation5], 16
    $region45: #{tpu_custom_call.1} parent=1 // pred_fallthru
      _
    %118 = sfence
    %119 = vsyncpa [#allocation4], 1
    %120 = vsyncpa [#allocation7], 1
    %121 = vsyncpa [#allocation5], 1

</llo_original>
